<compile_context>
chip_gen: v5e
topology: v5e:2x2
jax: 0.10.0
libtpu: 0.0.40
codegen_flags: <defaults>
</compile_context>

<pallas_src>
import functools

import jax
import jax.numpy as jnp
from jax import lax
from jax.experimental import pallas as pl
from jax.experimental.pallas import tpu as pltpu


def _vmem_spec():
    return pl.BlockSpec(memory_space=pltpu.MemorySpace.VMEM)


def _vmem_budget_bytes():
    """Per-generation VMEM budget used to size the mask tiles (double-buffered)."""
    phys = 64 * 1024 * 1024                      # conservative fallback (v7x-sized)
    try:
        info = pltpu.get_tpu_info()
        cap = getattr(info, "vmem_capacity_bytes", None)
        if cap:
            phys = int(cap)
    except Exception:
        pass
    # ~64 MiB on 128 MiB parts (v5e/v6e), ~45 MiB on 64 MiB parts (v7x)
    return min(64 * 1024 * 1024, int(phys * 0.7))


# --------------------------------------------------------------------------
# Kernel 1 (fused, single block): weighted CE + class error + cardinality +
# box L1/GIoU.  Natural layouts:
#   logits_ref : [B*Q, C+1]  (queries on sublanes, classes on lanes)
#   tgt_ref    : [B*Q, 1]    int32 target class per query
#   sbox_ref   : [Nb, 4]     matched predicted boxes (cx, cy, w, h)
#   tbox_ref   : [Nb, 4]     matched target boxes
#   stats_ref  : [1, 128]    lane0=ce_num lane1=ce_den lane2=l1 lane3=giou
#                            lane4=correct_count lane5=sum_b |card_b - len_b|
# --------------------------------------------------------------------------
def _labels_boxes_kernel(logits_ref, tgt_ref, sbox_ref, tbox_ref, stats_ref, *,
                         num_classes, eos_coef, batch, queries, tgt_lengths,
                         nm_boxes):
    logits = logits_ref[...].astype(jnp.float32)            # [BQ, C1]
    tgt = tgt_ref[...]                                      # [BQ, 1] int32
    bq, c1 = logits.shape

    cls = lax.broadcasted_iota(jnp.int32, (bq, c1), 1)      # class id per lane

    # ---- weighted cross entropy (log-softmax over the small class axis) ----
    m = jnp.max(logits, axis=1, keepdims=True)
    lse = jnp.log(jnp.sum(jnp.exp(logits - m), axis=1, keepdims=True))
    logit_t = jnp.sum(jnp.where(cls == tgt, logits, 0.0), axis=1, keepdims=True)
    nll = (m + lse) - logit_t                               # [BQ, 1]
    wt = jnp.where(tgt == num_classes, jnp.float32(eos_coef), jnp.float32(1.0))
    ce_num = jnp.sum(nll * wt)
    ce_den = jnp.sum(wt)

    # ---- class error: a matched query is correct iff its target logit is the max
    matched = tgt < num_classes
    correct = jnp.sum(jnp.where(matched & (logit_t >= m), 1.0, 0.0))

    # ---- cardinality: per-query "argmax != background", per-image L1 to lengths
    neg_big = jnp.float32(-1e30)
    fg_max = jnp.max(jnp.where(cls < num_classes, logits, neg_big),
                     axis=1, keepdims=True)
    bg = jnp.sum(jnp.where(cls == num_classes, logits, 0.0), axis=1, keepdims=True)
    ind = (fg_max >= bg).astype(jnp.float32)                # [BQ, 1]
    row = lax.broadcasted_iota(jnp.int32, (bq, 1), 0)
    card_err = jnp.float32(0.0)
    for b in range(batch):                                  # batch is small & static
        in_img = (row >= b * queries) & (row < (b + 1) * queries)
        card_b = jnp.sum(jnp.where(in_img, ind, 0.0))
        card_err = card_err + jnp.abs(card_b - jnp.float32(tgt_lengths[b]))

    # ---- box L1 + GIoU over matched boxes (natural [Nm, 4] layout) ----
    s = sbox_ref[...].astype(jnp.float32)
    t = tbox_ref[...].astype(jnp.float32)
    rowb = lax.broadcasted_iota(jnp.int32, (s.shape[0], 1), 0)
    bvalid = rowb < nm_boxes

    l1 = jnp.sum(jnp.where(bvalid, jnp.abs(s - t), 0.0))

    scx, scy, sw, sh = s[:, 0:1], s[:, 1:2], s[:, 2:3], s[:, 3:4]
    tcx, tcy, tw, th = t[:, 0:1], t[:, 1:2], t[:, 2:3], t[:, 3:4]
    sx0, sy0, sx1, sy1 = scx - 0.5 * sw, scy - 0.5 * sh, scx + 0.5 * sw, scy + 0.5 * sh
    tx0, ty0, tx1, ty1 = tcx - 0.5 * tw, tcy - 0.5 * th, tcx + 0.5 * tw, tcy + 0.5 * th

    area_s = (sx1 - sx0) * (sy1 - sy0)
    area_t = (tx1 - tx0) * (ty1 - ty0)
    iw = jnp.maximum(jnp.minimum(sx1, tx1) - jnp.maximum(sx0, tx0), 0.0)
    ih = jnp.maximum(jnp.minimum(sy1, ty1) - jnp.maximum(sy0, ty0), 0.0)
    inter = iw * ih
    union = area_s + area_t - inter
    iou = (inter + 1e-6) / (union + 1e-6)          # epsilons match reference box_iou()

    ew = jnp.maximum(jnp.maximum(sx1, tx1) - jnp.minimum(sx0, tx0), 0.0)
    eh = jnp.maximum(jnp.maximum(sy1, ty1) - jnp.minimum(sy0, ty0), 0.0)
    earea = ew * eh
    giou = iou - (earea - union + 1e-6) / (earea + 1e-6)
    giou_loss = jnp.sum(jnp.where(bvalid, 1.0 - giou, 0.0))

    # ---- pack all scalars into one lane-dense (1, 128) stats row ----
    lane = lax.broadcasted_iota(jnp.int32, (1, 128), 1)

    def put(idx, val):
        return jnp.where(lane == idx, jnp.reshape(val, (1, 1)), 0.0)

    stats_ref[...] = (put(0, ce_num) + put(1, ce_den) + put(2, l1)
                      + put(3, giou_loss) + put(4, correct) + put(5, card_err))


def labels_boxes_pallas(logits_2d, target_classes_2d, src_boxes, target_boxes,
                        num_classes, eos_coef, batch, queries, tgt_lengths):
    nm = int(src_boxes.shape[0])
    if nm == 0:                                   # keep a dummy row; it gets masked out
        src_boxes = jnp.zeros((1, 4), jnp.float32)
        target_boxes = jnp.zeros((1, 4), jnp.float32)
    # TODO(synk): if B*Q*(C+1)*4 ever exceeds ~16 MiB (stacked aux layers / very large
    # query*frame counts) this single-block kernel should be gridded over B*Q chunks.
    kernel = functools.partial(
        _labels_boxes_kernel, num_classes=int(num_classes), eos_coef=float(eos_coef),
        batch=int(batch), queries=int(queries),
        tgt_lengths=tuple(float(x) for x in tgt_lengths), nm_boxes=nm)
    stats = pl.pallas_call(
        kernel,
        out_shape=jax.ShapeDtypeStruct((1, 128), jnp.float32),
        in_specs=[_vmem_spec()] * 4,
        out_specs=_vmem_spec(),
        compiler_params=pltpu.CompilerParams(vmem_limit_bytes=32 * 1024 * 1024),
    )(logits_2d, target_classes_2d, src_boxes, target_boxes)
    return stats


# --------------------------------------------------------------------------
# Kernel 2 (gridded): sigmoid-focal + dice per-row partial sums over
# (row-tile, column-chunk) blocks.
#   src_ref   : [tile_n, tile_hw]  mask logits, native dtype (f32 or bf16)
#   tgt_ref   : [tile_n, tile_hw]  uint8 binary targets
#   stats_ref : [1, 1, tile_n, 4]  col0=focal row-sum col1=sum(p*t) col2=sum(p) col3=sum(t)
# --------------------------------------------------------------------------
def _masks_kernel(src_ref, tgt_ref, stats_ref):
    x = src_ref[...].astype(jnp.float32)          # upcast after DMA (bf16-friendly)
    tb = tgt_ref[...] > 0                         # binary targets

    # sigmoid + BCE-with-logits with a single exp / log / exact reciprocal
    e = jnp.exp(-jnp.abs(x))
    denom = 1.0 + e
    p = jnp.where(x >= 0.0, 1.0, e) / denom                     # sigmoid(x)
    ce = jnp.maximum(x, 0.0) - jnp.where(tb, x, 0.0) + jnp.log(denom)

    # focal term, exploiting binary targets: selects instead of multiplies
    p_t = jnp.where(tb, p, 1.0 - p)
    om = 1.0 - p_t
    alpha_t = jnp.where(tb, jnp.float32(0.25), jnp.float32(0.75))
    focal = alpha_t * ce * om * om

    # per-row partial sums; dice ratio is finished in JAX after summing col chunks
    frow = jnp.sum(focal, axis=1, keepdims=True)                # [tile_n, 1]
    pt = jnp.sum(jnp.where(tb, p, 0.0), axis=1, keepdims=True)  # sum p*t
    ps = jnp.sum(p, axis=1, keepdims=True)
    ts = jnp.sum(tb.astype(jnp.float32), axis=1, keepdims=True)

    col = lax.broadcasted_iota(jnp.int32, (frow.shape[0], 4), 1)
    packed = (jnp.where(col == 0, frow, 0.0) + jnp.where(col == 1, pt, 0.0)
              + jnp.where(col == 2, ps, 0.0) + jnp.where(col == 3, ts, 0.0))
    stats_ref[...] = packed.reshape(stats_ref.shape)


def masks_pallas(src_masks_flat, target_masks_u8):
    nm, hw = src_masks_flat.shape
    src_bytes = jnp.dtype(src_masks_flat.dtype).itemsize
    budget = _vmem_budget_bytes()

    # Rows per tile: the double-buffered src + u8 target streams must fit the budget.
    per_row = 2 * hw * (src_bytes + 1) + 64
    tile_cap = max(32, (budget // per_row) // 32 * 32)
    if nm <= tile_cap:
        tile_n, g_r = nm, 1          # single row tile == full row extent (no OOB rows)
    else:
        tile_n, g_r = tile_cap, -(-nm // tile_cap)   # ragged tail dropped via [:nm] slice

    # When the row grid is short, split HW into two column chunks so both v7x
    # TensorCores have work (neutral on single-core v5e/v6e).
    if g_r < 2 and hw % 256 == 0:
        g_c, tile_hw = 2, hw // 2
    else:
        g_c, tile_hw = 1, hw

    stats = pl.pallas_call(
        _masks_kernel,
        out_shape=jax.ShapeDtypeStruct((g_r, g_c, tile_n, 4), jnp.float32),
        grid=(g_r, g_c),
        in_specs=[pl.BlockSpec((tile_n, tile_hw), lambda r, c: (r, c)),
                  pl.BlockSpec((tile_n, tile_hw), lambda r, c: (r, c))],
        out_specs=pl.BlockSpec((1, 1, tile_n, 4), lambda r, c: (r, c, 0, 0)),
        compiler_params=pltpu.CompilerParams(
            dimension_semantics=("parallel", "parallel"),
            vmem_limit_bytes=int(budget * 1.25)),
    )(src_masks_flat, target_masks_u8)

    # Sum column-chunk partials, drop out-of-bounds tail rows, finish in JAX.
    rows = jnp.sum(stats, axis=1).reshape(g_r * tile_n, 4)[:nm]
    focal_sum = jnp.sum(rows[:, 0])
    pt, ps, ts = rows[:, 1], rows[:, 2], rows[:, 3]
    dice_sum = jnp.sum(1.0 - (2.0 * pt + 1.0) / (ps + ts + 1.0))
    return focal_sum, dice_sum


# --------------------------------------------------------------------------
# SetCriterion wrapper (plain-JAX glue around the two Pallas calls)
# --------------------------------------------------------------------------
class SetCriterionPallas:
    def __init__(self, num_classes, eos_coef=0.1,
                 losses=('labels', 'cardinality', 'boxes', 'masks')):
        self.num_classes = num_classes
        self.eos_coef = eos_coef
        self.losses = losses

    def matcher(self, outputs, targets):
        # TODO(synk): Hungarian matching (scipy linear_sum_assignment) has no clean
        # Pallas equivalent; a deterministic identity matching is used instead.
        return [(jnp.arange(t['labels'].shape[0], dtype=jnp.int32),
                 jnp.arange(t['labels'].shape[0], dtype=jnp.int32)) for t in targets]

    @staticmethod
    def _permutation_idx(indices):
        batch_idx = jnp.concatenate(
            [jnp.full_like(src, i) for i, (src, _) in enumerate(indices)])
        src_idx = jnp.concatenate([src for src, _ in indices])
        tgt_idx = jnp.concatenate([tgt for _, tgt in indices])
        return batch_idx, src_idx, tgt_idx

    def _labels_boxes_losses(self, pred_logits, pred_boxes, targets, indices,
                             num_boxes, log):
        batch_idx, src_idx, _ = self._permutation_idx(indices)
        B, Q, _ = pred_logits.shape
        BQ = B * Q

        target_classes_o = jnp.concatenate(
            [t['labels'][j] for t, (_, j) in zip(targets, indices)]).astype(jnp.int32)
        target_classes = jnp.full((B, Q), self.num_classes, jnp.int32)
        target_classes = target_classes.at[batch_idx, src_idx].set(target_classes_o)

        if 'boxes' in self.losses:
            src_boxes = pred_boxes[batch_idx, src_idx]
            target_boxes = jnp.concatenate(
                [t['boxes'][j] for t, (_, j) in zip(targets, indices)], axis=0)
        else:
            src_boxes = jnp.zeros((1, 4), jnp.float32)
            target_boxes = jnp.zeros((1, 4), jnp.float32)

        tgt_lengths = tuple(int(t['labels'].shape[0]) for t in targets)
        nm = int(sum(tgt_lengths))

        stats = labels_boxes_pallas(
            pred_logits.reshape(BQ, -1), target_classes.reshape(BQ, 1),
            src_boxes, target_boxes, self.num_classes, self.eos_coef,
            B, Q, tgt_lengths)

        out = {}
        if 'labels' in self.losses:
            out['loss_ce'] = stats[0, 0] / stats[0, 1]
            if log:
                out['class_error'] = 100.0 - 100.0 * stats[0, 4] / float(max(nm, 1))
        if 'cardinality' in self.losses:
            out['cardinality_error'] = stats[0, 5] / float(B)
        if 'boxes' in self.losses:
            out['loss_bbox'] = stats[0, 2] / num_boxes
            out['loss_giou'] = stats[0, 3] / num_boxes
        return out

    def forward(self, outputs, targets):
        outputs_without_aux = {k: v for k, v in outputs.items() if k != 'aux_outputs'}
        indices = self.matcher(outputs_without_aux, targets)

        # TODO(synk): torch.distributed all_reduce of num_boxes is skipped (single host).
        num_boxes = float(sum(int(t['labels'].shape[0]) for t in targets))
        num_boxes = max(num_boxes, 1.0)

        losses = {}
        losses.update(self._labels_boxes_losses(
            outputs['pred_logits'], outputs.get('pred_boxes'), targets, indices,
            num_boxes, log=True))

        if 'masks' in self.losses:
            batch_idx, src_idx, tgt_idx = self._permutation_idx(indices)
            src_masks = outputs['pred_masks'][batch_idx, src_idx]        # [Nm, H, W]
            tgt_stack = jnp.stack([t['masks'] for t in targets])         # [B, T, H, W]
            target_masks = tgt_stack[batch_idx, tgt_idx]                 # [Nm, H, W]
            # TODO(synk): nested-tensor padding of ragged target masks and bilinear
            # resize of src masks are identity here (equal spatial resolutions).
            Nm = int(src_masks.shape[0])
            if Nm == 0:
                losses['loss_mask'] = jnp.float32(0.0)
                losses['loss_dice'] = jnp.float32(0.0)
            else:
                HW = int(src_masks.shape[1]) * int(src_masks.shape[2])
                src_flat = src_masks.reshape(Nm, HW)             # native dtype, no copy
                # TODO(synk): uint8 targets assume strictly binary {0,1} masks.
                tgt_flat = target_masks.reshape(Nm, HW).astype(jnp.uint8)
                focal_sum, dice_sum = masks_pallas(src_flat, tgt_flat)
                losses['loss_mask'] = focal_sum / (float(HW) * num_boxes)
                losses['loss_dice'] = dice_sum / num_boxes

        if 'aux_outputs' in outputs:
            # NOTE: one fused labels/boxes kernel per decoder layer; stack layers on a
            # leading grid axis if this ever becomes dispatch-bound.
            for i, aux in enumerate(outputs['aux_outputs']):
                aux_indices = self.matcher(aux, targets)
                l_dict = self._labels_boxes_losses(
                    aux['pred_logits'], aux.get('pred_boxes'), targets, aux_indices,
                    num_boxes, log=False)
                losses.update({f"{k}_{i}": v for k, v in l_dict.items()})
        return losses


if __name__ == "__main__":
    key = jax.random.PRNGKey(0)
    B, Q, C, T, H, W = 2, 8, 4, 3, 16, 16   # batch, queries, classes, targets/img, H/W

    k = jax.random.split(key, 6)
    pred_logits = jax.random.normal(k[0], (B, Q, C + 1), jnp.float32)
    pred_boxes = jax.nn.sigmoid(jax.random.normal(k[1], (B, Q, 4), jnp.float32))
    pred_masks = jax.random.normal(k[2], (B, Q, H, W), jnp.float32)

    targets = []
    for b in range(B):
        kk = jax.random.split(k[3 + b], 3)
        labels = jax.random.randint(kk[0], (T,), 0, C, jnp.int32)
        boxes = jax.nn.sigmoid(jax.random.normal(kk[1], (T, 4), jnp.float32))
        masks = (jax.random.uniform(kk[2], (T, H, W)) > 0.5).astype(jnp.float32)
        targets.append({'labels': labels, 'boxes': boxes, 'masks': masks})

    outputs = {'pred_logits': pred_logits,
               'pred_boxes': pred_boxes,
               'pred_masks': pred_masks}

    criterion = SetCriterionPallas(num_classes=C, eos_coef=0.1)
    losses = criterion.forward(outputs, targets)
    losses = jax.tree_util.tree_map(jax.block_until_ready, losses)
    print("KERNEL_OK")
</pallas_src>

<mosaic_0001>
module attributes {stable_mosaic.version = 11 : i64} {
  func.func @_labels_boxes_kernel(%arg0: memref<16x5xf32, #tpu.memory_space<vmem>>, %arg1: memref<16x1xi32, #tpu.memory_space<vmem>>, %arg2: memref<6x4xf32, #tpu.memory_space<vmem>>, %arg3: memref<6x4xf32, #tpu.memory_space<vmem>>, %arg4: memref<1x128xf32, #tpu.memory_space<vmem>>) attributes {dimension_semantics = [], scalar_prefetch = 0 : i64, scratch_operands = 0 : i64, tpu.core_type = #tpu.core_type<tc>} {
    %c0 = arith.constant 0 : index
    %c0_0 = arith.constant 0 : index
    %0 = vector.load %arg0[%c0, %c0_0] : memref<16x5xf32, #tpu.memory_space<vmem>>, vector<16x5xf32>
    %c0_1 = arith.constant 0 : index
    %c0_2 = arith.constant 0 : index
    %1 = vector.load %arg1[%c0_1, %c0_2] : memref<16x1xi32, #tpu.memory_space<vmem>>, vector<16x1xi32>
    %2 = tpu.iota {dimensions = array<i32: 1>} : vector<16x5xi32>
    %cst = arith.constant dense<0xFF800000> : vector<16xf32>
    %3 = vector.multi_reduction <maximumf>, %0, %cst [1] : vector<16x5xf32> to vector<16xf32>
    %4 = vector.shape_cast %3 : vector<16xf32> to vector<16x1xf32>
    %5 = vector.broadcast %4 : vector<16x1xf32> to vector<16x5xf32>
    %6 = arith.subf %0, %5 : vector<16x5xf32>
    %7 = math.exp %6 : vector<16x5xf32>
    %cst_3 = arith.constant dense<0.000000e+00> : vector<16xf32>
    %8 = vector.multi_reduction <add>, %7, %cst_3 [1] : vector<16x5xf32> to vector<16xf32>
    %9 = vector.shape_cast %8 : vector<16xf32> to vector<16x1xf32>
    %10 = math.log %9 : vector<16x1xf32>
    %11 = vector.broadcast %1 : vector<16x1xi32> to vector<16x5xi32>
    %12 = arith.cmpi eq, %2, %11 : vector<16x5xi32>
    %cst_4 = arith.constant 0.000000e+00 : f32
    %13 = vector.broadcast %cst_4 : f32 to vector<16x5xf32>
    %14 = arith.select %12, %0, %13 : vector<16x5xi1>, vector<16x5xf32>
    %cst_5 = arith.constant dense<0.000000e+00> : vector<16xf32>
    %15 = vector.multi_reduction <add>, %14, %cst_5 [1] : vector<16x5xf32> to vector<16xf32>
    %16 = vector.shape_cast %15 : vector<16xf32> to vector<16x1xf32>
    %17 = arith.addf %4, %10 : vector<16x1xf32>
    %18 = arith.subf %17, %16 : vector<16x1xf32>
    %c4_i32 = arith.constant 4 : i32
    %19 = vector.broadcast %c4_i32 : i32 to vector<16x1xi32>
    %20 = arith.cmpi eq, %1, %19 : vector<16x1xi32>
    %cst_6 = arith.constant 1.000000e-01 : f32
    %cst_7 = arith.constant 1.000000e+00 : f32
    %21 = vector.broadcast %cst_6 : f32 to vector<16x1xf32>
    %22 = vector.broadcast %cst_7 : f32 to vector<16x1xf32>
    %23 = arith.select %20, %21, %22 : vector<16x1xi1>, vector<16x1xf32>
    %24 = arith.mulf %18, %23 : vector<16x1xf32>
    %25 = vector.shape_cast %24 : vector<16x1xf32> to vector<1x16x1xf32>
    %cst_8 = arith.constant dense<0.000000e+00> : vector<1xf32>
    %26 = vector.multi_reduction <add>, %25, %cst_8 [1, 2] : vector<1x16x1xf32> to vector<1xf32>
    %27 = vector.shape_cast %26 : vector<1xf32> to vector<1x1x1xf32>
    %28 = vector.extract %27[0, 0, 0] : f32 from vector<1x1x1xf32>
    %29 = vector.shape_cast %23 : vector<16x1xf32> to vector<1x16x1xf32>
    %cst_9 = arith.constant dense<0.000000e+00> : vector<1xf32>
    %30 = vector.multi_reduction <add>, %29, %cst_9 [1, 2] : vector<1x16x1xf32> to vector<1xf32>
    %31 = vector.shape_cast %30 : vector<1xf32> to vector<1x1x1xf32>
    %32 = vector.extract %31[0, 0, 0] : f32 from vector<1x1x1xf32>
    %c4_i32_10 = arith.constant 4 : i32
    %33 = vector.broadcast %c4_i32_10 : i32 to vector<16x1xi32>
    %34 = arith.cmpi slt, %1, %33 : vector<16x1xi32>
    %35 = arith.cmpf oge, %16, %4 : vector<16x1xf32>
    %36 = arith.andi %34, %35 : vector<16x1xi1>
    %cst_11 = arith.constant 1.000000e+00 : f32
    %cst_12 = arith.constant 0.000000e+00 : f32
    %37 = vector.broadcast %cst_11 : f32 to vector<16x1xf32>
    %38 = vector.broadcast %cst_12 : f32 to vector<16x1xf32>
    %39 = arith.select %36, %37, %38 : vector<16x1xi1>, vector<16x1xf32>
    %40 = vector.shape_cast %39 : vector<16x1xf32> to vector<1x16x1xf32>
    %cst_13 = arith.constant dense<0.000000e+00> : vector<1xf32>
    %41 = vector.multi_reduction <add>, %40, %cst_13 [1, 2] : vector<1x16x1xf32> to vector<1xf32>
    %42 = vector.shape_cast %41 : vector<1xf32> to vector<1x1x1xf32>
    %43 = vector.extract %42[0, 0, 0] : f32 from vector<1x1x1xf32>
    %c4_i32_14 = arith.constant 4 : i32
    %44 = vector.broadcast %c4_i32_14 : i32 to vector<16x5xi32>
    %45 = arith.cmpi slt, %2, %44 : vector<16x5xi32>
    %cst_15 = arith.constant -1.000000e+30 : f32
    %46 = vector.broadcast %cst_15 : f32 to vector<16x5xf32>
    %47 = arith.select %45, %0, %46 : vector<16x5xi1>, vector<16x5xf32>
    %cst_16 = arith.constant dense<0xFF800000> : vector<16xf32>
    %48 = vector.multi_reduction <maximumf>, %47, %cst_16 [1] : vector<16x5xf32> to vector<16xf32>
    %49 = vector.shape_cast %48 : vector<16xf32> to vector<16x1xf32>
    %c4_i32_17 = arith.constant 4 : i32
    %50 = vector.broadcast %c4_i32_17 : i32 to vector<16x5xi32>
    %51 = arith.cmpi eq, %2, %50 : vector<16x5xi32>
    %cst_18 = arith.constant 0.000000e+00 : f32
    %52 = vector.broadcast %cst_18 : f32 to vector<16x5xf32>
    %53 = arith.select %51, %0, %52 : vector<16x5xi1>, vector<16x5xf32>
    %cst_19 = arith.constant dense<0.000000e+00> : vector<16xf32>
    %54 = vector.multi_reduction <add>, %53, %cst_19 [1] : vector<16x5xf32> to vector<16xf32>
    %55 = vector.shape_cast %54 : vector<16xf32> to vector<16x1xf32>
    %56 = arith.cmpf oge, %49, %55 : vector<16x1xf32>
    %57 = arith.extui %56 : vector<16x1xi1> to vector<16x1xi32>
    %58 = arith.sitofp %57 : vector<16x1xi32> to vector<16x1xf32>
    %59 = tpu.iota {dimensions = array<i32: 0>} : vector<16x1xi32>
    %c0_i32 = arith.constant 0 : i32
    %60 = vector.broadcast %c0_i32 : i32 to vector<16x1xi32>
    %61 = arith.cmpi sge, %59, %60 : vector<16x1xi32>
    %c8_i32 = arith.constant 8 : i32
    %62 = vector.broadcast %c8_i32 : i32 to vector<16x1xi32>
    %63 = arith.cmpi slt, %59, %62 : vector<16x1xi32>
    %64 = arith.andi %61, %63 : vector<16x1xi1>
    %cst_20 = arith.constant 0.000000e+00 : f32
    %65 = vector.broadcast %cst_20 : f32 to vector<16x1xf32>
    %66 = arith.select %64, %58, %65 : vector<16x1xi1>, vector<16x1xf32>
    %67 = vector.shape_cast %66 : vector<16x1xf32> to vector<1x16x1xf32>
    %cst_21 = arith.constant dense<0.000000e+00> : vector<1xf32>
    %68 = vector.multi_reduction <add>, %67, %cst_21 [1, 2] : vector<1x16x1xf32> to vector<1xf32>
    %69 = vector.shape_cast %68 : vector<1xf32> to vector<1x1x1xf32>
    %70 = vector.extract %69[0, 0, 0] : f32 from vector<1x1x1xf32>
    %cst_22 = arith.constant 3.000000e+00 : f32
    %71 = arith.subf %70, %cst_22 : f32
    %72 = math.absf %71 : f32
    %cst_23 = arith.constant 0.000000e+00 : f32
    %73 = arith.addf %cst_23, %72 : f32
    %c8_i32_24 = arith.constant 8 : i32
    %74 = vector.broadcast %c8_i32_24 : i32 to vector<16x1xi32>
    %75 = arith.cmpi sge, %59, %74 : vector<16x1xi32>
    %c16_i32 = arith.constant 16 : i32
    %76 = vector.broadcast %c16_i32 : i32 to vector<16x1xi32>
    %77 = arith.cmpi slt, %59, %76 : vector<16x1xi32>
    %78 = arith.andi %75, %77 : vector<16x1xi1>
    %cst_25 = arith.constant 0.000000e+00 : f32
    %79 = vector.broadcast %cst_25 : f32 to vector<16x1xf32>
    %80 = arith.select %78, %58, %79 : vector<16x1xi1>, vector<16x1xf32>
    %81 = vector.shape_cast %80 : vector<16x1xf32> to vector<1x16x1xf32>
    %cst_26 = arith.constant dense<0.000000e+00> : vector<1xf32>
    %82 = vector.multi_reduction <add>, %81, %cst_26 [1, 2] : vector<1x16x1xf32> to vector<1xf32>
    %83 = vector.shape_cast %82 : vector<1xf32> to vector<1x1x1xf32>
    %84 = vector.extract %83[0, 0, 0] : f32 from vector<1x1x1xf32>
    %cst_27 = arith.constant 3.000000e+00 : f32
    %85 = arith.subf %84, %cst_27 : f32
    %86 = math.absf %85 : f32
    %87 = arith.addf %73, %86 : f32
    %c0_28 = arith.constant 0 : index
    %c0_29 = arith.constant 0 : index
    %88 = vector.load %arg2[%c0_28, %c0_29] : memref<6x4xf32, #tpu.memory_space<vmem>>, vector<6x4xf32>
    %c0_30 = arith.constant 0 : index
    %c0_31 = arith.constant 0 : index
    %89 = vector.load %arg3[%c0_30, %c0_31] : memref<6x4xf32, #tpu.memory_space<vmem>>, vector<6x4xf32>
    %90 = tpu.iota {dimensions = array<i32: 0>} : vector<6x1xi32>
    %c6_i32 = arith.constant 6 : i32
    %91 = vector.broadcast %c6_i32 : i32 to vector<6x1xi32>
    %92 = arith.cmpi slt, %90, %91 : vector<6x1xi32>
    %93 = arith.subf %88, %89 : vector<6x4xf32>
    %94 = math.absf %93 : vector<6x4xf32>
    %cst_32 = arith.constant 0.000000e+00 : f32
    %95 = vector.shape_cast %92 : vector<6x1xi1> to vector<6x1xi1>
    %96 = vector.broadcast %95 : vector<6x1xi1> to vector<6x4xi1>
    %97 = vector.broadcast %cst_32 : f32 to vector<6x4xf32>
    %98 = arith.select %96, %94, %97 : vector<6x4xi1>, vector<6x4xf32>
    %99 = vector.shape_cast %98 : vector<6x4xf32> to vector<1x6x4xf32>
    %cst_33 = arith.constant dense<0.000000e+00> : vector<1xf32>
    %100 = vector.multi_reduction <add>, %99, %cst_33 [1, 2] : vector<1x6x4xf32> to vector<1xf32>
    %101 = vector.shape_cast %100 : vector<1xf32> to vector<1x1x1xf32>
    %102 = vector.extract %101[0, 0, 0] : f32 from vector<1x1x1xf32>
    %103 = vector.extract_strided_slice %88 {offsets = [0, 0], sizes = [6, 1], strides = [1, 1]} : vector<6x4xf32> to vector<6x1xf32>
    %104 = vector.extract_strided_slice %88 {offsets = [0, 1], sizes = [6, 1], strides = [1, 1]} : vector<6x4xf32> to vector<6x1xf32>
    %105 = vector.extract_strided_slice %88 {offsets = [0, 2], sizes = [6, 1], strides = [1, 1]} : vector<6x4xf32> to vector<6x1xf32>
    %106 = vector.extract_strided_slice %88 {offsets = [0, 3], sizes = [6, 1], strides = [1, 1]} : vector<6x4xf32> to vector<6x1xf32>
    %107 = vector.extract_strided_slice %89 {offsets = [0, 0], sizes = [6, 1], strides = [1, 1]} : vector<6x4xf32> to vector<6x1xf32>
    %108 = vector.extract_strided_slice %89 {offsets = [0, 1], sizes = [6, 1], strides = [1, 1]} : vector<6x4xf32> to vector<6x1xf32>
    %109 = vector.extract_strided_slice %89 {offsets = [0, 2], sizes = [6, 1], strides = [1, 1]} : vector<6x4xf32> to vector<6x1xf32>
    %110 = vector.extract_strided_slice %89 {offsets = [0, 3], sizes = [6, 1], strides = [1, 1]} : vector<6x4xf32> to vector<6x1xf32>
    %cst_34 = arith.constant 5.000000e-01 : f32
    %111 = vector.broadcast %cst_34 : f32 to vector<6x1xf32>
    %112 = arith.mulf %111, %105 : vector<6x1xf32>
    %113 = arith.subf %103, %112 : vector<6x1xf32>
    %cst_35 = arith.constant 5.000000e-01 : f32
    %114 = vector.broadcast %cst_35 : f32 to vector<6x1xf32>
    %115 = arith.mulf %114, %106 : vector<6x1xf32>
    %116 = arith.subf %104, %115 : vector<6x1xf32>
    %cst_36 = arith.constant 5.000000e-01 : f32
    %117 = vector.broadcast %cst_36 : f32 to vector<6x1xf32>
    %118 = arith.mulf %117, %105 : vector<6x1xf32>
    %119 = arith.addf %103, %118 : vector<6x1xf32>
    %cst_37 = arith.constant 5.000000e-01 : f32
    %120 = vector.broadcast %cst_37 : f32 to vector<6x1xf32>
    %121 = arith.mulf %120, %106 : vector<6x1xf32>
    %122 = arith.addf %104, %121 : vector<6x1xf32>
    %cst_38 = arith.constant 5.000000e-01 : f32
    %123 = vector.broadcast %cst_38 : f32 to vector<6x1xf32>
    %124 = arith.mulf %123, %109 : vector<6x1xf32>
    %125 = arith.subf %107, %124 : vector<6x1xf32>
    %cst_39 = arith.constant 5.000000e-01 : f32
    %126 = vector.broadcast %cst_39 : f32 to vector<6x1xf32>
    %127 = arith.mulf %126, %110 : vector<6x1xf32>
    %128 = arith.subf %108, %127 : vector<6x1xf32>
    %cst_40 = arith.constant 5.000000e-01 : f32
    %129 = vector.broadcast %cst_40 : f32 to vector<6x1xf32>
    %130 = arith.mulf %129, %109 : vector<6x1xf32>
    %131 = arith.addf %107, %130 : vector<6x1xf32>
    %cst_41 = arith.constant 5.000000e-01 : f32
    %132 = vector.broadcast %cst_41 : f32 to vector<6x1xf32>
    %133 = arith.mulf %132, %110 : vector<6x1xf32>
    %134 = arith.addf %108, %133 : vector<6x1xf32>
    %135 = arith.subf %119, %113 : vector<6x1xf32>
    %136 = arith.subf %122, %116 : vector<6x1xf32>
    %137 = arith.mulf %135, %136 : vector<6x1xf32>
    %138 = arith.subf %131, %125 : vector<6x1xf32>
    %139 = arith.subf %134, %128 : vector<6x1xf32>
    %140 = arith.mulf %138, %139 : vector<6x1xf32>
    %141 = arith.minimumf %119, %131 : vector<6x1xf32>
    %142 = arith.maximumf %113, %125 : vector<6x1xf32>
    %143 = arith.subf %141, %142 : vector<6x1xf32>
    %cst_42 = arith.constant 0.000000e+00 : f32
    %144 = vector.broadcast %cst_42 : f32 to vector<6x1xf32>
    %145 = arith.maximumf %143, %144 : vector<6x1xf32>
    %146 = arith.minimumf %122, %134 : vector<6x1xf32>
    %147 = arith.maximumf %116, %128 : vector<6x1xf32>
    %148 = arith.subf %146, %147 : vector<6x1xf32>
    %cst_43 = arith.constant 0.000000e+00 : f32
    %149 = vector.broadcast %cst_43 : f32 to vector<6x1xf32>
    %150 = arith.maximumf %148, %149 : vector<6x1xf32>
    %151 = arith.mulf %145, %150 : vector<6x1xf32>
    %152 = arith.addf %137, %140 : vector<6x1xf32>
    %153 = arith.subf %152, %151 : vector<6x1xf32>
    %cst_44 = arith.constant 9.99999997E-7 : f32
    %154 = vector.broadcast %cst_44 : f32 to vector<6x1xf32>
    %155 = arith.addf %151, %154 : vector<6x1xf32>
    %cst_45 = arith.constant 9.99999997E-7 : f32
    %156 = vector.broadcast %cst_45 : f32 to vector<6x1xf32>
    %157 = arith.addf %153, %156 : vector<6x1xf32>
    %158 = arith.divf %155, %157 : vector<6x1xf32>
    %159 = arith.maximumf %119, %131 : vector<6x1xf32>
    %160 = arith.minimumf %113, %125 : vector<6x1xf32>
    %161 = arith.subf %159, %160 : vector<6x1xf32>
    %cst_46 = arith.constant 0.000000e+00 : f32
    %162 = vector.broadcast %cst_46 : f32 to vector<6x1xf32>
    %163 = arith.maximumf %161, %162 : vector<6x1xf32>
    %164 = arith.maximumf %122, %134 : vector<6x1xf32>
    %165 = arith.minimumf %116, %128 : vector<6x1xf32>
    %166 = arith.subf %164, %165 : vector<6x1xf32>
    %cst_47 = arith.constant 0.000000e+00 : f32
    %167 = vector.broadcast %cst_47 : f32 to vector<6x1xf32>
    %168 = arith.maximumf %166, %167 : vector<6x1xf32>
    %169 = arith.mulf %163, %168 : vector<6x1xf32>
    %170 = arith.subf %169, %153 : vector<6x1xf32>
    %cst_48 = arith.constant 9.99999997E-7 : f32
    %171 = vector.broadcast %cst_48 : f32 to vector<6x1xf32>
    %172 = arith.addf %170, %171 : vector<6x1xf32>
    %cst_49 = arith.constant 9.99999997E-7 : f32
    %173 = vector.broadcast %cst_49 : f32 to vector<6x1xf32>
    %174 = arith.addf %169, %173 : vector<6x1xf32>
    %175 = arith.divf %172, %174 : vector<6x1xf32>
    %176 = arith.subf %158, %175 : vector<6x1xf32>
    %cst_50 = arith.constant 1.000000e+00 : f32
    %177 = vector.broadcast %cst_50 : f32 to vector<6x1xf32>
    %178 = arith.subf %177, %176 : vector<6x1xf32>
    %cst_51 = arith.constant 0.000000e+00 : f32
    %179 = vector.broadcast %cst_51 : f32 to vector<6x1xf32>
    %180 = arith.select %92, %178, %179 : vector<6x1xi1>, vector<6x1xf32>
    %181 = vector.shape_cast %180 : vector<6x1xf32> to vector<1x6x1xf32>
    %cst_52 = arith.constant dense<0.000000e+00> : vector<1xf32>
    %182 = vector.multi_reduction <add>, %181, %cst_52 [1, 2] : vector<1x6x1xf32> to vector<1xf32>
    %183 = vector.shape_cast %182 : vector<1xf32> to vector<1x1x1xf32>
    %184 = vector.extract %183[0, 0, 0] : f32 from vector<1x1x1xf32>
    %185 = tpu.iota {dimensions = array<i32: 1>} : vector<1x128xi32>
    %c0_i32_53 = arith.constant 0 : i32
    %186 = vector.broadcast %c0_i32_53 : i32 to vector<1x128xi32>
    %187 = arith.cmpi eq, %185, %186 : vector<1x128xi32>
    %188 = vector.broadcast %28 : f32 to vector<1x1xf32>
    %cst_54 = arith.constant 0.000000e+00 : f32
    %189 = vector.shape_cast %188 : vector<1x1xf32> to vector<1x1xf32>
    %190 = vector.broadcast %189 : vector<1x1xf32> to vector<1x128xf32>
    %191 = vector.broadcast %cst_54 : f32 to vector<1x128xf32>
    %192 = arith.select %187, %190, %191 : vector<1x128xi1>, vector<1x128xf32>
    %c1_i32 = arith.constant 1 : i32
    %193 = vector.broadcast %c1_i32 : i32 to vector<1x128xi32>
    %194 = arith.cmpi eq, %185, %193 : vector<1x128xi32>
    %195 = vector.broadcast %32 : f32 to vector<1x1xf32>
    %cst_55 = arith.constant 0.000000e+00 : f32
    %196 = vector.shape_cast %195 : vector<1x1xf32> to vector<1x1xf32>
    %197 = vector.broadcast %196 : vector<1x1xf32> to vector<1x128xf32>
    %198 = vector.broadcast %cst_55 : f32 to vector<1x128xf32>
    %199 = arith.select %194, %197, %198 : vector<1x128xi1>, vector<1x128xf32>
    %200 = arith.addf %192, %199 : vector<1x128xf32>
    %c2_i32 = arith.constant 2 : i32
    %201 = vector.broadcast %c2_i32 : i32 to vector<1x128xi32>
    %202 = arith.cmpi eq, %185, %201 : vector<1x128xi32>
    %203 = vector.broadcast %102 : f32 to vector<1x1xf32>
    %cst_56 = arith.constant 0.000000e+00 : f32
    %204 = vector.shape_cast %203 : vector<1x1xf32> to vector<1x1xf32>
    %205 = vector.broadcast %204 : vector<1x1xf32> to vector<1x128xf32>
    %206 = vector.broadcast %cst_56 : f32 to vector<1x128xf32>
    %207 = arith.select %202, %205, %206 : vector<1x128xi1>, vector<1x128xf32>
    %208 = arith.addf %200, %207 : vector<1x128xf32>
    %c3_i32 = arith.constant 3 : i32
    %209 = vector.broadcast %c3_i32 : i32 to vector<1x128xi32>
    %210 = arith.cmpi eq, %185, %209 : vector<1x128xi32>
    %211 = vector.broadcast %184 : f32 to vector<1x1xf32>
    %cst_57 = arith.constant 0.000000e+00 : f32
    %212 = vector.shape_cast %211 : vector<1x1xf32> to vector<1x1xf32>
    %213 = vector.broadcast %212 : vector<1x1xf32> to vector<1x128xf32>
    %214 = vector.broadcast %cst_57 : f32 to vector<1x128xf32>
    %215 = arith.select %210, %213, %214 : vector<1x128xi1>, vector<1x128xf32>
    %216 = arith.addf %208, %215 : vector<1x128xf32>
    %c4_i32_58 = arith.constant 4 : i32
    %217 = vector.broadcast %c4_i32_58 : i32 to vector<1x128xi32>
    %218 = arith.cmpi eq, %185, %217 : vector<1x128xi32>
    %219 = vector.broadcast %43 : f32 to vector<1x1xf32>
    %cst_59 = arith.constant 0.000000e+00 : f32
    %220 = vector.shape_cast %219 : vector<1x1xf32> to vector<1x1xf32>
    %221 = vector.broadcast %220 : vector<1x1xf32> to vector<1x128xf32>
    %222 = vector.broadcast %cst_59 : f32 to vector<1x128xf32>
    %223 = arith.select %218, %221, %222 : vector<1x128xi1>, vector<1x128xf32>
    %224 = arith.addf %216, %223 : vector<1x128xf32>
    %c5_i32 = arith.constant 5 : i32
    %225 = vector.broadcast %c5_i32 : i32 to vector<1x128xi32>
    %226 = arith.cmpi eq, %185, %225 : vector<1x128xi32>
    %227 = vector.broadcast %87 : f32 to vector<1x1xf32>
    %cst_60 = arith.constant 0.000000e+00 : f32
    %228 = vector.shape_cast %227 : vector<1x1xf32> to vector<1x1xf32>
    %229 = vector.broadcast %228 : vector<1x1xf32> to vector<1x128xf32>
    %230 = vector.broadcast %cst_60 : f32 to vector<1x128xf32>
    %231 = arith.select %226, %229, %230 : vector<1x128xi1>, vector<1x128xf32>
    %232 = arith.addf %224, %231 : vector<1x128xf32>
    %c0_61 = arith.constant 0 : index
    %c0_62 = arith.constant 0 : index
    %233 = vector.load %arg4[%c0_61, %c0_62] : memref<1x128xf32, #tpu.memory_space<vmem>>, vector<1x128xf32>
    tpu.vector_store %arg4[%c0_61, %c0_62], %232 {strides = array<i32>} : memref<1x128xf32, #tpu.memory_space<vmem>>, vector<1x128xf32>,
    return
  }
}

</mosaic_0001>

<llo_original>
// kernel: tpu_custom_call.1
$region0: #{tpu_custom_call.1}
  #allocation0 [shape = 'u32[]', space=smem, size = 0x4, offset = 0x4, fixed_abs, tag = 'smem constant byte address 0x4 - core index']
  #allocation1 [shape = 'u32[72,128]{1,0:T(1,128)}', space=vmem, size = 0x9000, scoped, tag = 'internal scratch']
  %s0 = inlined_call_operand.vmem [shape: f32[16,5], index: 0, kind: input, shape index: {}]
  %s1 = inlined_call_operand.vmem [shape: s32[16,1], index: 1, kind: input, shape index: {}]
  %s2 = inlined_call_operand.vmem [shape: f32[6,4], index: 2, kind: input, shape index: {}]
  %s3 = inlined_call_operand.vmem [shape: f32[6,4], index: 3, kind: input, shape index: {}]
  %s4 = inlined_call_operand.hbm [shape: f32[1,128], index: 4, kind: output, shape index: {}]
  %s5 = sld [smem:[#allocation0]]
  $region26: #{tpu_custom_call.1} parent=0
    _
  %s7 = ssub.s32 1, %s5
  %s8 = scalar_select 0, %s7, %s5
  $region1: #{tpu_custom_call.1} parent=0
    #allocation2 [shape = 'u8[512]{0}', space=vmem, size = 0x400, scoped, tag = 'output window, operand 0, single buffered']
    #allocation3 [shape = 's32[1]{0}', space=sflag, size = 0x4, scoped, tag = 'scoped memory for tpu_custom_call.1']
    %9 = vsyncpa [#allocation3], 0
    // Predicated region
    $region2: #{tpu_custom_call.1} parent=1 // pred_check
      _
    $region3: #{tpu_custom_call.1} parent=1 // pred_check_branch
      %11 = sbr.rel (0) target = $region5
    $region4: #{tpu_custom_call.1} parent=1 // pred_region
      _
    $region5: #{tpu_custom_call.1} parent=1 // pred_fallthru
      _
    // Predicated region
    $region6: #{tpu_custom_call.1} parent=1 // pred_check
      _
    $region7: #{tpu_custom_call.1} parent=1 // pred_check_branch
      %13 = sbr.rel (0) target = $region9
    $region8: #{tpu_custom_call.1} parent=1 // pred_region
      _
    $region9: #{tpu_custom_call.1} parent=1 // pred_fallthru
      _
    // Predicated region
    $region10: #{tpu_custom_call.1} parent=1 // pred_check
      _
    $region11: #{tpu_custom_call.1} parent=1 // pred_check_branch
      %15 = sbr.rel (0) target = $region13
    $region12: #{tpu_custom_call.1} parent=1 // pred_region
      _
    $region13: #{tpu_custom_call.1} parent=1 // pred_fallthru
      _
    // Predicated region
    $region14: #{tpu_custom_call.1} parent=1 // pred_check
      _
    $region15: #{tpu_custom_call.1} parent=1 // pred_check_branch
      %17 = sbr.rel (0) target = $region17
    $region16: #{tpu_custom_call.1} parent=1 // pred_region
      _
    $region17: #{tpu_custom_call.1} parent=1 // pred_fallthru
      _
    %v18 = vld [vmem:[%s0] sm:$0xff]
    %v19 = vld [vmem:[%s0 + $0x8] sm:$0xff]
    %v20 = vld [vmem:[%s1] sm:$0xff]
    %v21 = vld [vmem:[%s1 + $0x8] sm:$0xff]
    %v22 = vlaneseq
    %v23 = vand.u32 %v22, 127
    %vm24 = vcmask 39936
    %v25 = vsel %vm24, %v18, -inf
    %26 = vmax.xlane.f32.xlu0 %v25
    %v27 = vpop.xlane.xlu0 %26
    %v28 = vsel %vm24, %v19, -inf
    %29 = vmax.xlane.f32.xlu0 %v28
    %v30 = vpop.xlane.xlu0 %29
    %v31 = vsub.f32 %v18, %v27
    %v32 = vsub.f32 %v19, %v30
    %v33 = vmul.f32 %v31, 1.442695
    %v34 = vpow.pop %v33
    %v35 = vmul.f32 %v32, 1.442695
    %v36 = vpow.pop %v35
    %v37 = vsel %vm24, %v34, 0.0
    %38 = vadd.xlane.f32.xlu0 %v37
    %v39 = vpop.xlane.xlu0 %38
    %v40 = vsel %vm24, %v36, 0.0
    %41 = vadd.xlane.f32.xlu0 %v40
    %v42 = vpop.xlane.xlu0 %41
    %v43 = vlog2.pop %v39
    %v44 = vmul.f32 %v43, 0.6931472
    %v45 = vlog2.pop %v42
    %v46 = vmul.f32 %v45, 0.6931472
    %47 = vset.pattern.permute.xlu0 0
    %48 = vperm.xlu0 %47, %v20
    %v49 = vpop.permute.xlu0 %48
    %50 = vset.pattern.permute.xlu0 0
    %51 = vperm.xlu0 %50, %v21
    %v52 = vpop.permute.xlu0 %51
    %vm53 = vcmp.eq.s32.totalorder %v23, %v49
    %vm54 = vcmp.eq.s32.totalorder %v23, %v52
    %v55 = vsel %vm53, %v18, 0.0
    %v56 = vsel %vm54, %v19, 0.0
    %v57 = vsel %vm24, %v55, 0.0
    %58 = vadd.xlane.f32.xlu0 %v57
    %v59 = vpop.xlane.xlu0 %58
    %v60 = vsel %vm24, %v56, 0.0
    %61 = vadd.xlane.f32.xlu0 %v60
    %v62 = vpop.xlane.xlu0 %61
    %v63 = vadd.f32 %v27, %v44
    %v64 = vadd.f32 %v30, %v46
    %v65 = vsub.f32 %v63, %v59
    %v66 = vsub.f32 %v64, %v62
    %vm67 = vcmp.eq.s32.totalorder %v20, 4
    %vm68 = vcmp.eq.s32.totalorder %v21, 4
    %v69 = vsel %vm67, 0.1, 1.0
    %v70 = vsel %vm68, 0.1, 1.0
    %v71 = vmul.f32 %v65, %v69
    %v72 = vmul.f32 %v66, %v70
    %vm73 = vcmask 7168
    %v74 = vsel %vm73, %v71, 0.0
    %v75 = vsel %vm73, %v72, 0.0
    %v76 = vadd.f32 %v74, %v75
    %77 = vadd.xlane.f32.xlu0 %v76
    %v78 = vpop.xlane.xlu0 %77
    %v79 = vrot.slane %v78, 4
    %v80 = vadd.f32 %v78, %v79
    %v81 = vrot.slane %v80, 2
    %v82 = vadd.f32 %v80, %v81
    %v83 = vrot.slane %v82, 1
    %v84 = vadd.f32 %v82, %v83
    %s85 = vtos %v84
    %v86 = vsel %vm73, %v69, 0.0
    %v87 = vsel %vm73, %v70, 0.0
    %v88 = vadd.f32 %v86, %v87
    %89 = vadd.xlane.f32.xlu0 %v88
    %v90 = vpop.xlane.xlu0 %89
    %v91 = vrot.slane %v90, 4
    %v92 = vadd.f32 %v90, %v91
    %v93 = vrot.slane %v92, 2
    %v94 = vadd.f32 %v92, %v93
    %v95 = vrot.slane %v94, 1
    %v96 = vadd.f32 %v94, %v95
    %s97 = vtos %v96
    %vm98 = vcmp.lt.s32.totalorder %v20, 4
    %vm99 = vcmp.lt.s32.totalorder %v21, 4
    %vm100 = vcmp.ge.f32.partialorder %v59, %v27
    %vm101 = vcmp.ge.f32.partialorder %v62, %v30
    %vm102 = vmand %vm98, %vm100
    %vm103 = vmand %vm99, %vm101
    %v104 = vsel %vm102, 1.0, 0.0
    %v105 = vsel %vm103, 1.0, 0.0
    %v106 = vsel %vm73, %v104, 0.0
    %v107 = vsel %vm73, %v105, 0.0
    %v108 = vadd.f32 %v106, %v107
    %109 = vadd.xlane.f32.xlu0 %v108
    %v110 = vpop.xlane.xlu0 %109
    %v111 = vrot.slane %v110, 4
    %v112 = vadd.f32 %v110, %v111
    %v113 = vrot.slane %v112, 2
    %v114 = vadd.f32 %v112, %v113
    %v115 = vrot.slane %v114, 1
    %v116 = vadd.f32 %v114, %v115
    %s117 = vtos %v116
    %vm118 = vcmp.lt.s32.totalorder %v23, 4
    %v119 = vsel %vm118, %v18, -1e+30
    %v120 = vsel %vm118, %v19, -1e+30
    %v121 = vsel %vm24, %v119, -inf
    %122 = vmax.xlane.f32.xlu0 %v121
    %v123 = vpop.xlane.xlu0 %122
    %v124 = vsel %vm24, %v120, -inf
    %125 = vmax.xlane.f32.xlu0 %v124
    %v126 = vpop.xlane.xlu0 %125
    %vm127 = vcmp.eq.s32.totalorder %v23, 4
    %v128 = vsel %vm127, %v18, 0.0
    %v129 = vsel %vm127, %v19, 0.0
    %v130 = vsel %vm24, %v128, 0.0
    %131 = vadd.xlane.f32.xlu0 %v130
    %v132 = vpop.xlane.xlu0 %131
    %v133 = vsel %vm24, %v129, 0.0
    %134 = vadd.xlane.f32.xlu0 %v133
    %v135 = vpop.xlane.xlu0 %134
    %vm136 = vcmp.ge.f32.partialorder %v123, %v132
    %vm137 = vcmp.ge.f32.partialorder %v126, %v135
    %v138 = vsel %vm136, 1, 0
    %v139 = vsel %vm137, 1, 0
    %v140 = vcvt.s32.f32 %v138
    %v141 = vcvt.s32.f32 %v139
    %v142 = vlaneseq
    %v143 = vshrl.u32 %v142, 7
    %v144 = vadd.s32 %v143, 8
    %vm145 = vcmp.ge.s32.totalorder %v143, 0
    %vm146 = vcmp.ge.s32.totalorder %v144, 0
    %vm147 = vcmp.lt.s32.totalorder %v143, 8
    %vm148 = vcmp.lt.s32.totalorder %v144, 8
    %vm149 = vmand %vm145, %vm147
    %vm150 = vmand %vm146, %vm148
    %v151 = vsel %vm149, %v140, 0.0
    %v152 = vsel %vm150, %v141, 0.0
    %v153 = vsel %vm73, %v151, 0.0
    %v154 = vsel %vm73, %v152, 0.0
    %v155 = vadd.f32 %v153, %v154
    %156 = vadd.xlane.f32.xlu0 %v155
    %v157 = vpop.xlane.xlu0 %156
    %v158 = vrot.slane %v157, 4
    %v159 = vadd.f32 %v157, %v158
    %v160 = vrot.slane %v159, 2
    %v161 = vadd.f32 %v159, %v160
    %v162 = vrot.slane %v161, 1
    %v163 = vadd.f32 %v161, %v162
    %s164 = vtos %v163
    %s165 = ssub.f32 %s164, 3.0
    %s166 = sand.u32 2147483647, %s165
    %s167 = sadd.f32 %s166, 0.0
    %vm168 = vcmp.ge.s32.totalorder %v143, 8
    %vm169 = vcmp.ge.s32.totalorder %v144, 8
    %vm170 = vcmp.lt.s32.totalorder %v143, 16
    %vm171 = vcmp.lt.s32.totalorder %v144, 16
    %vm172 = vmand %vm168, %vm170
    %vm173 = vmand %vm169, %vm171
    %v174 = vsel %vm172, %v140, 0.0
    %v175 = vsel %vm173, %v141, 0.0
    %v176 = vsel %vm73, %v174, 0.0
    %v177 = vsel %vm73, %v175, 0.0
    %v178 = vadd.f32 %v176, %v177
    %179 = vadd.xlane.f32.xlu0 %v178
    %v180 = vpop.xlane.xlu0 %179
    %v181 = vrot.slane %v180, 4
    %v182 = vadd.f32 %v180, %v181
    %v183 = vrot.slane %v182, 2
    %v184 = vadd.f32 %v182, %v183
    %v185 = vrot.slane %v184, 1
    %v186 = vadd.f32 %v184, %v185
    %s187 = vtos %v186
    %s188 = ssub.f32 %s187, 3.0
    %s189 = sand.u32 2147483647, %s188
    %s190 = sadd.f32 %s167, %s189
    %v191 = vld [vmem:[%s2] sm:$0x3f]
    %v192 = vld [vmem:[%s3] sm:$0x3f]
    %vm193 = vcmp.lt.s32.totalorder %v143, 6
    %v194 = vsub.f32 %v191, %v192
    %v195 = vand.u32 2147483647, %v194
    %v196 = vsel %vm193, 1, 0
    %vm197 = vcmp.eq.s32.totalorder %v196, 1
    %v198 = vsel %vm197, %v195, 0.0
    %vm199 = vcmask 29696
    %v200 = vsel %vm199, %v198, 0.0
    %201 = vadd.xlane.f32.xlu0 %v200
    %v202 = vpop.xlane.xlu0 %201
    %v203 = vrot.slane %v202, 4
    %v204 = vadd.f32 %v202, %v203
    %v205 = vrot.slane %v204, 2
    %v206 = vadd.f32 %v204, %v205
    %v207 = vrot.slane %v206, 1
    %v208 = vadd.f32 %v206, %v207
    %s209 = vtos %v208
    %v210 = vmul.f32 %v191, 0.5
    %212 = vrot.lane.b32.xlu0 %v210, 126
    %v213 = vpop.permute.xlu0 %212
    %v215 = vsub.f32 %v191, %v213
    %v216 = vadd.f32 %v191, %v213
    %v217 = vmul.f32 %v192, 0.5
    %219 = vrot.lane.b32.xlu0 %v217, 126
    %v220 = vpop.permute.xlu0 %219
    %v222 = vsub.f32 %v192, %v220
    %v223 = vadd.f32 %v192, %v220
    %v224 = vsub.f32 %v216, %v215
    %226 = vrot.lane.b32.xlu0 %v224, 127
    %v227 = vpop.permute.xlu0 %226
    %v229 = vmul.f32 %v224, %v227
    %v230 = vsub.f32 %v223, %v222
    %232 = vrot.lane.b32.xlu0 %v230, 127
    %v233 = vpop.permute.xlu0 %232
    %v235 = vmul.f32 %v230, %v233
    %v236 = vmin.f32 %v216, %v223
    %v237 = vmax.f32 %v215, %v222
    %v238 = vsub.f32 %v236, %v237
    %v239 = vmax.f32 %v238, 0.0
    %241 = vrot.lane.b32.xlu0 %v239, 127
    %v242 = vpop.permute.xlu0 %241
    %v244 = vmul.f32 %v239, %v242
    %v245 = vadd.f32 %v229, %v235
    %v246 = vsub.f32 %v245, %v244
    %v247 = vadd.f32 %v244, 1e-06
    %v248 = vadd.f32 %v246, 1e-06
    %v249 = vrcp.pop %v248
    %v250 = vmul.f32 %v248, %v249
    %v251 = vsub.f32 1.0, %v250
    %v252 = vmul.f32 %v249, %v251
    %v253 = vadd.f32 %v249, %v252
    %vm254 = vweird.f32 %v248
    %vm255 = vweird.f32 %v249
    %vm256 = vmor %vm254, %vm255
    %v257 = vsel %vm256, %v249, %v253
    %v258 = vand.u32 2147483647, %v248
    %vm259 = vcmp.eq.f32.partialorder %v258, 8.507059e+37
    %v260 = vand.u32 %v248, 2147483648
    %v261 = vor.u32 1.1754944e-38, %v260
    %v262 = vsel %vm259, %v261, %v257
    %v263 = vmul.f32 %v247, %v262
    %v264 = vmax.f32 %v216, %v223
    %v265 = vmin.f32 %v215, %v222
    %v266 = vsub.f32 %v264, %v265
    %v267 = vmax.f32 %v266, 0.0
    %269 = vrot.lane.b32.xlu0 %v267, 127
    %v270 = vpop.permute.xlu0 %269
    %v272 = vmul.f32 %v267, %v270
    %v273 = vsub.f32 %v272, %v246
    %v274 = vadd.f32 %v273, 1e-06
    %v275 = vadd.f32 %v272, 1e-06
    %v276 = vrcp.pop %v275
    %v277 = vmul.f32 %v275, %v276
    %v278 = vsub.f32 1.0, %v277
    %v279 = vmul.f32 %v276, %v278
    %v280 = vadd.f32 %v276, %v279
    %vm281 = vweird.f32 %v275
    %vm282 = vweird.f32 %v276
    %vm283 = vmor %vm281, %vm282
    %v284 = vsel %vm283, %v276, %v280
    %v285 = vand.u32 2147483647, %v275
    %vm286 = vcmp.eq.f32.partialorder %v285, 8.507059e+37
    %v287 = vand.u32 %v275, 2147483648
    %v288 = vor.u32 1.1754944e-38, %v287
    %v289 = vsel %vm286, %v288, %v284
    %v290 = vmul.f32 %v274, %v289
    %v291 = vsub.f32 %v263, %v290
    %v292 = vsub.f32 1.0, %v291
    %v293 = vsel %vm193, %v292, 0.0
    %vm294 = vcmask 5120
    %v295 = vsel %vm294, %v293, 0.0
    %296 = vadd.xlane.f32.xlu0 %v295
    %v297 = vpop.xlane.xlu0 %296
    %v298 = vrot.slane %v297, 4
    %v299 = vadd.f32 %v297, %v298
    %v300 = vrot.slane %v299, 2
    %v301 = vadd.f32 %v299, %v300
    %v302 = vrot.slane %v301, 1
    %v303 = vadd.f32 %v301, %v302
    %s304 = vtos %v303
    %vm305 = vcmp.eq.s32.totalorder %v23, 0
    %v306 = vstv %s85
    %v307 = vsel %vm305, %v306, 0.0
    %vm308 = vcmp.eq.s32.totalorder %v23, 1
    %v309 = vstv %s97
    %v310 = vsel %vm308, %v309, 0.0
    %v311 = vadd.f32 %v307, %v310
    %vm312 = vcmp.eq.s32.totalorder %v23, 2
    %v313 = vstv %s209
    %v314 = vsel %vm312, %v313, 0.0
    %v315 = vadd.f32 %v311, %v314
    %vm316 = vcmp.eq.s32.totalorder %v23, 3
    %v317 = vstv %s304
    %v318 = vsel %vm316, %v317, 0.0
    %v319 = vadd.f32 %v315, %v318
    %v320 = vstv %s117
    %v321 = vsel %vm127, %v320, 0.0
    %v322 = vadd.f32 %v319, %v321
    %vm323 = vcmp.eq.s32.totalorder %v23, 5
    %v324 = vstv %s190
    %v325 = vsel %vm323, %v324, 0.0
    %v326 = vadd.f32 %v322, %v325
    %327 = vst [vmem:[#allocation2] sm:$0x1] %v326
    // Predicated region
    $region18: #{tpu_custom_call.1} parent=1 // pred_check
      _
    $region19: #{tpu_custom_call.1} parent=1 // pred_check_branch
      %329 = sbr.rel (0) target = $region21
    $region20: #{tpu_custom_call.1} parent=1 // pred_region
      %331 = vsyncadd [#allocation3], 0
      %s333 = sshll.u32 [#allocation2], 4
      %s334 = int_to_ptr.vmem [resolvable:$true] %s333
      %s335 = sshll.u32 %s4, 4
      %s336 = int_to_ptr.hbm [resolvable:$true] %s335
      %338 = dma.vmem_to_hbm [thread:$0]  %s334, 16, %s336, [#allocation3]
    $region21: #{tpu_custom_call.1} parent=1 // pred_fallthru
      _
    // Predicated region
    $region22: #{tpu_custom_call.1} parent=1 // pred_check
      _
    $region23: #{tpu_custom_call.1} parent=1 // pred_check_branch
      %340 = sbr.rel (0) target = $region25
    $region24: #{tpu_custom_call.1} parent=1 // pred_region
      %342 = dma.done [#allocation3], 16
    $region25: #{tpu_custom_call.1} parent=1 // pred_fallthru
      _
    %343 = vsyncpa [#allocation3], 1

</llo_original>
